<compile_context>
chip_gen: v7x
topology: tpu7x:2x2x1
jax: 0.10.0
libtpu: 0.0.40
codegen_flags: <defaults>
</compile_context>

<pallas_src>
import functools

import jax
import jax.numpy as jnp
from jax.experimental import pallas as pl
from jax.experimental.pallas import tpu as pltpu

INPUT_DIM = 4
HIDDEN_DIM = 32
KERNEL_SIZE = 5
LN_EPS = 1e-5


def _dng_kernel(x_ref, pc_ref, ph_ref, o_ref, *, K):
    """One grid step = G batch elements, full (lane-padded) sequence length.

    Block shapes:
      x_ref : (G*C, Lp)            rows = (batch-in-group, channel), lanes = seq
      pc_ref: (G*C, G*H + K + 2)   [ block-diag W_out | depthwise taps | b_dw | b_out ]
      ph_ref: (G*H, G*C + G*H + 3) [ block-diag W_pw | block-diag mean matrix |
                                     b_pw | gamma | beta ]
      o_ref : (G*C, Lp)
    """
    GC, Lp = x_ref.shape
    GH = ph_ref.shape[0]
    pad = K // 2

    x = x_ref[...]                                    # (GC, Lp) f32
    pc = pc_ref[...]
    ph = ph_ref[...]
    w_out = pc[:, :GH]                                # (GC, GH)  block-diagonal
    wdw = pc[:, GH:GH + K]                            # (GC, K)   per-row conv taps
    bdw = pc[:, GH + K:GH + K + 1]                    # (GC, 1)
    bout = pc[:, GH + K + 1:GH + K + 2]               # (GC, 1)
    w_pw = ph[:, :GC]                                 # (GH, GC)  block-diagonal
    m_avg = ph[:, GC:GC + GH]                         # (GH, GH)  block-diag 1/H avg
    bpw = ph[:, GC + GH:GC + GH + 1]                  # (GH, 1)
    gamma = ph[:, GC + GH + 1:GC + GH + 2]            # (GH, 1)
    beta = ph[:, GC + GH + 2:GC + GH + 3]             # (GH, 1)

    # Depthwise conv; zero padding done in-kernel on the VMEM tile (no wrapper
    # pad pass).  Lanes >= L of x are already zero, so the right edge is exact.
    zpad = jnp.zeros((GC, pad), jnp.float32)
    xp = jnp.concatenate([zpad, x, zpad], axis=1)     # (GC, Lp + 2*pad)
    acc = xp[:, 0:Lp] * wdw[:, 0:1]
    for k in range(1, K):                             # static K-tap unroll (K=5)
        acc = acc + xp[:, k:k + Lp] * wdw[:, k:k + 1]
    dw = jnp.maximum(acc + bdw, 0.0)                  # ReLU, (GC, Lp)

    # Pointwise 1x1 conv C->H for all G batches in one MXU matmul.
    h = jnp.dot(w_pw, dw, preferred_element_type=jnp.float32) + bpw   # (GH, Lp)

    # LayerNorm over H within each batch group.  Per-group mean/variance are
    # computed with the block-diagonal averaging matmul (row-replicated), so
    # everything stays on 2-D lane-dense tiles.  Two-pass variance.
    mean = jnp.dot(m_avg, h, preferred_element_type=jnp.float32)      # (GH, Lp)
    cen = h - mean
    var = jnp.dot(m_avg, cen * cen, preferred_element_type=jnp.float32)
    hn = cen * jax.lax.rsqrt(var + LN_EPS) * gamma + beta             # (GH, Lp)

    # Output 1x1 conv H->C, tanh, residual; lane-dense store.
    y = jnp.dot(w_out, hn, preferred_element_type=jnp.float32) + bout  # (GC, Lp)
    o_ref[...] = x + jnp.tanh(y)


def _padded_tile_bytes(rows, cols, itemsize=4):
    """VMEM footprint of an f32 (rows, cols) tile after (8,128) layout padding."""
    return (-(-rows // 8) * 8) * (-(-cols // 128) * 128) * itemsize


def _vmem_need_bytes(GC, GH, Lp, K):
    """Rough per-step VMEM requirement (double-buffered I/O + live temporaries)."""
    io = 2 * 2 * _padded_tile_bytes(GC, Lp)                        # x + out, 2 buffers each
    params = 2 * (_padded_tile_bytes(GC, GH + K + 2)
                  + _padded_tile_bytes(GH, GC + GH + 3))
    interm = (_padded_tile_bytes(GC, Lp + 2 * (K // 2))            # padded x
              + 4 * _padded_tile_bytes(GC, Lp)                     # conv / y temporaries
              + 6 * _padded_tile_bytes(GH, Lp))                    # h / LN temporaries
    return io + params + interm + (2 << 20)                        # misc slack


def _choose_group(B, C, H, Lp, K, vmem_budget, max_g=16):
    """Pick G = batch elements folded into sublanes per grid step.

    Preference: sublane-dense (G*C % 8 == 0), fits the VMEM budget, even grid
    step count (balances v7x's two TensorCores), then the largest such G
    (denser MXU contraction, fewer grid steps)."""
    divs = [g for g in range(1, B + 1) if B % g == 0]
    dense = [g for g in divs
             if (g * C) % 8 == 0 and g <= max_g
             and _vmem_need_bytes(g * C, g * H, Lp, K) <= vmem_budget]
    if not dense:
        # Fallback: single block covering all rows (block dim == full array dim,
        # so the (8,128) rule is still satisfied even if B*C % 8 != 0).
        return B
    even_steps = [g for g in dense if (B // g) % 2 == 0]
    if even_steps:
        return max(even_steps)
    one_step = [g for g in dense if B // g == 1]
    if one_step:
        return max(one_step)
    return max(dense)


def depthwise_nuisance_generator(x, params):
    """x: (B, L, C) float32 -> (B, L, C) float32 (PyTorch-module interface)."""
    wdw, bdw, wpw, bpw, gamma, beta, wout, bout = params
    B, L, C = x.shape
    H, K = wpw.shape[0], wdw.shape[1]

    # Lane-dense sequence length (multiple of 128).
    Lp = max(128, -(-L // 128) * 128)

    # Per-generation VMEM capacity (64 MiB on v7x, 128 MiB on v5e/v6e).
    try:
        vmem_cap = int(getattr(pltpu.get_tpu_info(), "vmem_capacity_bytes", 0)) or (64 << 20)
    except Exception:
        vmem_cap = 64 << 20

    G = _choose_group(B, C, H, Lp, K, vmem_budget=int(0.4 * vmem_cap))
    GC, GH = G * C, G * H
    steps = B // G

    # ---- single staging copy: channels-last (B,L,C) -> compute slab (B*C,Lp).
    # The transpose, reshape and lane padding fuse into one XLA copy under jit.
    xs = jnp.transpose(x, (0, 2, 1)).reshape(B * C, L)
    if Lp != L:
        xs = jnp.pad(xs, ((0, 0), (0, Lp - L)))

    # ---- tiny parameter slabs, pre-tiled / block-diagonalized for the G-fold.
    eye_g = jnp.eye(G, dtype=jnp.float32)
    w_out_bd = jnp.kron(eye_g, wout)                                  # (GC, GH)
    w_pw_bd = jnp.kron(eye_g, wpw)                                    # (GH, GC)
    m_avg = jnp.kron(eye_g, jnp.full((H, H), 1.0 / H, jnp.float32))   # (GH, GH)
    p_gc = jnp.concatenate(
        [w_out_bd, jnp.tile(wdw, (G, 1)),
         jnp.tile(bdw, G)[:, None], jnp.tile(bout, G)[:, None]], axis=1)
    p_gh = jnp.concatenate(
        [w_pw_bd, m_avg, jnp.tile(bpw, G)[:, None],
         jnp.tile(gamma, G)[:, None], jnp.tile(beta, G)[:, None]], axis=1)

    need = _vmem_need_bytes(GC, GH, Lp, K)
    vmem_limit = int(min(vmem_cap // 2, max(2 * need, 32 << 20)))
    vmem_limit = max(vmem_limit, need)

    cost = pl.CostEstimate(
        flops=int(B * Lp * (2 * C * K + 4 * C * H * G + 4 * H * H * G + 10 * H)),
        transcendentals=int(B * Lp * (C + 1)),        # tanh + rsqrt
        bytes_accessed=int(2 * B * C * Lp * 4 + (p_gc.size + p_gh.size) * 4),
    )

    kernel = functools.partial(_dng_kernel, K=K)

    out_slab = pl.pallas_call(
        kernel,
        out_shape=jax.ShapeDtypeStruct((B * C, Lp), jnp.float32),
        grid_spec=pltpu.PrefetchScalarGridSpec(
            num_scalar_prefetch=0,
            grid=(steps,),
            in_specs=[
                pl.BlockSpec((GC, Lp), lambda i: (i, 0)),             # x slab
                pl.BlockSpec((GC, GH + K + 2), lambda i: (0, 0)),     # C-sized params
                pl.BlockSpec((GH, GC + GH + 3), lambda i: (0, 0)),    # H-sized params
            ],
            out_specs=pl.BlockSpec((GC, Lp), lambda i: (i, 0)),
        ),
        compiler_params=pltpu.CompilerParams(
            dimension_semantics=("parallel",),
            vmem_limit_bytes=vmem_limit,
        ),
        cost_estimate=cost,
    )(xs, p_gc, p_gh)

    # Back to the module's channels-last interface (layout plumbing only).
    return out_slab[:, :L].reshape(B, C, L).transpose(0, 2, 1)


def init_params(key, input_dim=INPUT_DIM, hidden_dim=HIDDEN_DIM,
                kernel_size=KERNEL_SIZE):
    """Canonical (PyTorch-shaped) parameters:
       depthwise Conv1d(C,C,K,groups=C): weight (C,K), bias (C,)
       pointwise Conv1d(C,H,1):          weight (H,C), bias (H,)
       LayerNorm(H):                     gamma/beta (H,)
       output    Conv1d(H,C,1):          weight (C,H), bias (C,)"""
    C, H, K = input_dim, hidden_dim, kernel_size
    ks = jax.random.split(key, 6)
    wdw = 0.1 * jax.random.normal(ks[0], (C, K), jnp.float32)
    bdw = 0.1 * jax.random.normal(ks[1], (C,), jnp.float32)
    wpw = 0.1 * jax.random.normal(ks[2], (H, C), jnp.float32)
    bpw = 0.1 * jax.random.normal(ks[3], (H,), jnp.float32)
    gamma = jnp.ones((H,), jnp.float32)
    beta = jnp.zeros((H,), jnp.float32)
    wout = 0.1 * jax.random.normal(ks[4], (C, H), jnp.float32)
    bout = 0.1 * jax.random.normal(ks[5], (C,), jnp.float32)
    return (wdw, bdw, wpw, bpw, gamma, beta, wout, bout)


def reference(x, params):
    """Pure-JAX reference mirroring the PyTorch forward (channels-last)."""
    wdw, bdw, wpw, bpw, gamma, beta, wout, bout = params
    B, L, C = x.shape
    K = wdw.shape[1]
    pad = K // 2
    xp = jnp.pad(x, ((0, 0), (pad, pad), (0, 0)))
    dw = jnp.zeros_like(x) + bdw
    for k in range(K):
        dw = dw + xp[:, k:k + L, :] * wdw[:, k]
    dw = jnp.maximum(dw, 0.0)
    h = dw @ wpw.T + bpw                                  # (B, L, H)
    mean = jnp.mean(h, axis=-1, keepdims=True)
    var = jnp.mean((h - mean) ** 2, axis=-1, keepdims=True)
    hn = (h - mean) / jnp.sqrt(var + LN_EPS) * gamma + beta
    y = jnp.tanh(hn @ wout.T + bout)
    return x + y


if __name__ == "__main__":
    key = jax.random.PRNGKey(0)
    kx, kp = jax.random.split(key)
    B, L, C = 4, 16, INPUT_DIM
    x = jax.random.normal(kx, (B, L, C), jnp.float32)
    params = init_params(kp)

    fwd = jax.jit(depthwise_nuisance_generator)
    out = jax.block_until_ready(fwd(x, params))

    ref = reference(x, params)
    assert out.shape == (B, L, C)
    err = float(jnp.max(jnp.abs(out - ref)))
    assert jnp.allclose(out, ref, atol=1e-4, rtol=1e-4), f"max|diff|={err}"
    print("KERNEL_OK")
</pallas_src>

<mosaic_0001>
module attributes {stable_mosaic.version = 11 : i64} {
  func.func @_dng_kernel(%arg0: i32, %arg1: memref<8x128xf32, #tpu.memory_space<vmem>>, %arg2: memref<8x71xf32, #tpu.memory_space<vmem>>, %arg3: memref<64x75xf32, #tpu.memory_space<vmem>>, %arg4: memref<8x128xf32, #tpu.memory_space<vmem>>) attributes {dimension_semantics = [#tpu.dimension_semantics<parallel>], iteration_bounds = array<i64: 2>, scalar_prefetch = 0 : i64, scratch_operands = 0 : i64, tpu.core_type = #tpu.core_type<tc>, window_params = [{transform_indices = @transform_0, window_bounds = array<i64: 8, 128>}, {pipeline_mode = #tpu.pipeline_mode<synchronous>, transform_indices = @transform_1, window_bounds = array<i64: 8, 71>}, {pipeline_mode = #tpu.pipeline_mode<synchronous>, transform_indices = @transform_2, window_bounds = array<i64: 64, 75>}, {transform_indices = @transform_3, window_bounds = array<i64: 8, 128>}]} {
    %c0 = arith.constant 0 : index
    %c0_0 = arith.constant 0 : index
    %0 = vector.load %arg1[%c0, %c0_0] : memref<8x128xf32, #tpu.memory_space<vmem>>, vector<8x128xf32>
    %c0_1 = arith.constant 0 : index
    %c0_2 = arith.constant 0 : index
    %1 = vector.load %arg2[%c0_1, %c0_2] : memref<8x71xf32, #tpu.memory_space<vmem>>, vector<8x71xf32>
    %c0_3 = arith.constant 0 : index
    %c0_4 = arith.constant 0 : index
    %2 = vector.load %arg3[%c0_3, %c0_4] : memref<64x75xf32, #tpu.memory_space<vmem>>, vector<64x75xf32>
    %3 = vector.extract_strided_slice %1 {offsets = [0, 0], sizes = [8, 64], strides = [1, 1]} : vector<8x71xf32> to vector<8x64xf32>
    %4 = vector.extract_strided_slice %1 {offsets = [0, 64], sizes = [8, 5], strides = [1, 1]} : vector<8x71xf32> to vector<8x5xf32>
    %5 = vector.extract_strided_slice %1 {offsets = [0, 69], sizes = [8, 1], strides = [1, 1]} : vector<8x71xf32> to vector<8x1xf32>
    %6 = vector.extract_strided_slice %1 {offsets = [0, 70], sizes = [8, 1], strides = [1, 1]} : vector<8x71xf32> to vector<8x1xf32>
    %7 = vector.extract_strided_slice %2 {offsets = [0, 0], sizes = [64, 8], strides = [1, 1]} : vector<64x75xf32> to vector<64x8xf32>
    %8 = vector.extract_strided_slice %2 {offsets = [0, 8], sizes = [64, 64], strides = [1, 1]} : vector<64x75xf32> to vector<64x64xf32>
    %9 = vector.extract_strided_slice %2 {offsets = [0, 72], sizes = [64, 1], strides = [1, 1]} : vector<64x75xf32> to vector<64x1xf32>
    %10 = vector.extract_strided_slice %2 {offsets = [0, 73], sizes = [64, 1], strides = [1, 1]} : vector<64x75xf32> to vector<64x1xf32>
    %11 = vector.extract_strided_slice %2 {offsets = [0, 74], sizes = [64, 1], strides = [1, 1]} : vector<64x75xf32> to vector<64x1xf32>
    %cst = arith.constant 0.000000e+00 : f32
    %12 = vector.broadcast %cst : f32 to vector<8x2xf32>
    %13 = tpu.concatenate %12, %0, %12 in 1 : vector<8x2xf32>, vector<8x128xf32>, vector<8x2xf32> -> vector<8x132xf32>
    %14 = vector.extract_strided_slice %13 {offsets = [0, 0], sizes = [8, 128], strides = [1, 1]} : vector<8x132xf32> to vector<8x128xf32>
    %15 = vector.extract_strided_slice %4 {offsets = [0, 0], sizes = [8, 1], strides = [1, 1]} : vector<8x5xf32> to vector<8x1xf32>
    %16 = vector.broadcast %15 : vector<8x1xf32> to vector<8x128xf32>
    %17 = arith.mulf %14, %16 : vector<8x128xf32>
    %18 = vector.extract_strided_slice %13 {offsets = [0, 1], sizes = [8, 128], strides = [1, 1]} : vector<8x132xf32> to vector<8x128xf32>
    %19 = vector.extract_strided_slice %4 {offsets = [0, 1], sizes = [8, 1], strides = [1, 1]} : vector<8x5xf32> to vector<8x1xf32>
    %20 = vector.broadcast %19 : vector<8x1xf32> to vector<8x128xf32>
    %21 = arith.mulf %18, %20 : vector<8x128xf32>
    %22 = arith.addf %17, %21 : vector<8x128xf32>
    %23 = vector.extract_strided_slice %13 {offsets = [0, 2], sizes = [8, 128], strides = [1, 1]} : vector<8x132xf32> to vector<8x128xf32>
    %24 = vector.extract_strided_slice %4 {offsets = [0, 2], sizes = [8, 1], strides = [1, 1]} : vector<8x5xf32> to vector<8x1xf32>
    %25 = vector.broadcast %24 : vector<8x1xf32> to vector<8x128xf32>
    %26 = arith.mulf %23, %25 : vector<8x128xf32>
    %27 = arith.addf %22, %26 : vector<8x128xf32>
    %28 = vector.extract_strided_slice %13 {offsets = [0, 3], sizes = [8, 128], strides = [1, 1]} : vector<8x132xf32> to vector<8x128xf32>
    %29 = vector.extract_strided_slice %4 {offsets = [0, 3], sizes = [8, 1], strides = [1, 1]} : vector<8x5xf32> to vector<8x1xf32>
    %30 = vector.broadcast %29 : vector<8x1xf32> to vector<8x128xf32>
    %31 = arith.mulf %28, %30 : vector<8x128xf32>
    %32 = arith.addf %27, %31 : vector<8x128xf32>
    %33 = vector.extract_strided_slice %13 {offsets = [0, 4], sizes = [8, 128], strides = [1, 1]} : vector<8x132xf32> to vector<8x128xf32>
    %34 = vector.extract_strided_slice %4 {offsets = [0, 4], sizes = [8, 1], strides = [1, 1]} : vector<8x5xf32> to vector<8x1xf32>
    %35 = vector.broadcast %34 : vector<8x1xf32> to vector<8x128xf32>
    %36 = arith.mulf %33, %35 : vector<8x128xf32>
    %37 = arith.addf %32, %36 : vector<8x128xf32>
    %38 = vector.broadcast %5 : vector<8x1xf32> to vector<8x128xf32>
    %39 = arith.addf %37, %38 : vector<8x128xf32>
    %cst_5 = arith.constant 0.000000e+00 : f32
    %40 = vector.broadcast %cst_5 : f32 to vector<8x128xf32>
    %41 = arith.maximumf %39, %40 : vector<8x128xf32>
    %cst_6 = arith.constant dense<0.000000e+00> : vector<64x128xf32>
    %42 = tpu.matmul %7, %41, %cst_6 {dimension_numbers = #tpu.dot_dimension_numbers<[1], [0], [0], [1], [0, 0, 1, 1], [], []>} : vector<64x8xf32>, vector<8x128xf32>, vector<64x128xf32> -> vector<64x128xf32>
    %43 = vector.broadcast %9 : vector<64x1xf32> to vector<64x128xf32>
    %44 = arith.addf %42, %43 : vector<64x128xf32>
    %cst_7 = arith.constant dense<0.000000e+00> : vector<64x128xf32>
    %45 = tpu.matmul %8, %44, %cst_7 {dimension_numbers = #tpu.dot_dimension_numbers<[1], [0], [0], [1], [0, 0, 1, 1], [], []>} : vector<64x64xf32>, vector<64x128xf32>, vector<64x128xf32> -> vector<64x128xf32>
    %46 = arith.subf %44, %45 : vector<64x128xf32>
    %47 = arith.mulf %46, %46 : vector<64x128xf32>
    %cst_8 = arith.constant dense<0.000000e+00> : vector<64x128xf32>
    %48 = tpu.matmul %8, %47, %cst_8 {dimension_numbers = #tpu.dot_dimension_numbers<[1], [0], [0], [1], [0, 0, 1, 1], [], []>} : vector<64x64xf32>, vector<64x128xf32>, vector<64x128xf32> -> vector<64x128xf32>
    %cst_9 = arith.constant 9.99999974E-6 : f32
    %49 = vector.broadcast %cst_9 : f32 to vector<64x128xf32>
    %50 = arith.addf %48, %49 : vector<64x128xf32>
    %51 = math.rsqrt %50 : vector<64x128xf32>
    %52 = arith.mulf %46, %51 : vector<64x128xf32>
    %53 = vector.broadcast %10 : vector<64x1xf32> to vector<64x128xf32>
    %54 = arith.mulf %52, %53 : vector<64x128xf32>
    %55 = vector.broadcast %11 : vector<64x1xf32> to vector<64x128xf32>
    %56 = arith.addf %54, %55 : vector<64x128xf32>
    %cst_10 = arith.constant dense<0.000000e+00> : vector<8x128xf32>
    %57 = tpu.matmul %3, %56, %cst_10 {dimension_numbers = #tpu.dot_dimension_numbers<[1], [0], [0], [1], [0, 0, 1, 1], [], []>} : vector<8x64xf32>, vector<64x128xf32>, vector<8x128xf32> -> vector<8x128xf32>
    %58 = vector.broadcast %6 : vector<8x1xf32> to vector<8x128xf32>
    %59 = arith.addf %57, %58 : vector<8x128xf32>
    %60 = math.tanh %59 : vector<8x128xf32>
    %61 = arith.addf %0, %60 : vector<8x128xf32>
    %c0_11 = arith.constant 0 : index
    %c0_12 = arith.constant 0 : index
    %62 = vector.load %arg4[%c0_11, %c0_12] : memref<8x128xf32, #tpu.memory_space<vmem>>, vector<8x128xf32>
    tpu.vector_store %arg4[%c0_11, %c0_12], %61 {strides = array<i32>} : memref<8x128xf32, #tpu.memory_space<vmem>>, vector<8x128xf32>,
    return
  }
  func.func @transform_0(%arg0: i32) -> (i32, i32) {
    %c0_i32 = arith.constant 0 : i32
    %c0_i32_0 = arith.constant 0 : i32
    return %arg0, %c0_i32 : i32, i32
  }
  func.func @transform_1(%arg0: i32) -> (i32, i32) {
    %c0_i32 = arith.constant 0 : i32
    %c0_i32_0 = arith.constant 0 : i32
    %c0_i32_1 = arith.constant 0 : i32
    return %c0_i32, %c0_i32_0 : i32, i32
  }
  func.func @transform_2(%arg0: i32) -> (i32, i32) {
    %c0_i32 = arith.constant 0 : i32
    %c0_i32_0 = arith.constant 0 : i32
    %c0_i32_1 = arith.constant 0 : i32
    return %c0_i32, %c0_i32_0 : i32, i32
  }
  func.func @transform_3(%arg0: i32) -> (i32, i32) {
    %c0_i32 = arith.constant 0 : i32
    %c0_i32_0 = arith.constant 0 : i32
    return %arg0, %c0_i32 : i32, i32
  }
}

</mosaic_0001>

<llo_original>
// kernel: tile.48
$region0: #{tile.48}
  #allocation0 [shape = 's32[1]{0}', space=sflag, size = 0x4, scoped, tag = 'scoped memory for tile.48']
  %s0 = inlined_call_operand.vmem [shape: f32[32], index: 0, kind: input, shape index: {}]
  %s1 = inlined_call_operand.vmem [shape: f32[2,32], index: 1, kind: output, shape index: {}]
  // Predicated region
  $region2: #{tile.48} parent=0 // pred_check
    _
  $region3: #{tile.48} parent=0 // pred_check_branch
    %3 = sbr.rel (0) target = $region5
  $region4: #{tile.48} parent=0 // pred_region
    _
  $region5: #{tile.48} parent=0 // pred_fallthru
    _
  %v4 = vld [vmem:[%s0] ss:$0 sm:$0xff]
  %5 = vst [vmem:[%s1] sm:$0x3] %v4

// kernel: tile.2
$region0: #{tile.2}
  %s0 = inlined_call_operand.vmem [shape: f32[2,32], index: 0, kind: input, shape index: {}]
  %s1 = inlined_call_operand.vmem [shape: f32[64,1], index: 1, kind: output, shape index: {}]
  $region1: #{tile.2} parent=0
    #allocation0 [shape = 'u8[4096]{0}', space=vmem, size = 0x1000, scoped, tag = 'scoped mem for input reshape']
    %s3 = sshllo.u32 0, 2
    %v4 = vld [vmem:[%s0] sm:%s3]
    %5 = vst [vmem:[#allocation0] sm:%s3] %v4
    %v6 = vld [vmem:[#allocation0] sm:$0x3]
    %vm7 = vcmask 7168
    %8 = vst.msk [vmem:[%s1] sm:$0x1] %vm7, %v6
    %s9 = scalar_lea.vmem %s1, 31
    %10 = vst.msk [vmem:[%s9] sm:$0x2] %vm7, %v6
    %v11 = vld [vmem:[#allocation0] sm:$0x3]
    %12 = vrot.lane.b32.xlu0 %v11, 127
    %v13 = vpop.permute.xlu0 %12
    %vm14 = vcmask 7168
    %s15 = scalar_lea.vmem %s1, 1
    %16 = vst.msk [vmem:[%s15] sm:$0x1] %vm14, %v13
    %s17 = scalar_lea.vmem %s1, 32
    %18 = vst.msk [vmem:[%s17] sm:$0x2] %vm14, %v13
    %v19 = vld [vmem:[#allocation0] sm:$0x3]
    %20 = vrot.lane.b32.xlu0 %v19, 126
    %v21 = vpop.permute.xlu0 %20
    %vm22 = vcmask 7168
    %s23 = scalar_lea.vmem %s1, 2
    %24 = vst.msk [vmem:[%s23] sm:$0x1] %vm22, %v21
    %s25 = scalar_lea.vmem %s1, 33
    %26 = vst.msk [vmem:[%s25] sm:$0x2] %vm22, %v21
    %v27 = vld [vmem:[#allocation0] sm:$0x3]
    %28 = vrot.lane.b32.xlu0 %v27, 125
    %v29 = vpop.permute.xlu0 %28
    %vm30 = vcmask 7168
    %s31 = scalar_lea.vmem %s1, 3
    %32 = vst.msk [vmem:[%s31] sm:$0x1] %vm30, %v29
    %s33 = scalar_lea.vmem %s1, 34
    %34 = vst.msk [vmem:[%s33] sm:$0x2] %vm30, %v29
    %v35 = vld [vmem:[#allocation0] sm:$0x3]
    %36 = vrot.lane.b32.xlu0 %v35, 124
    %v37 = vpop.permute.xlu0 %36
    %vm38 = vcmask 7168
    %s39 = scalar_lea.vmem %s1, 4
    %40 = vst.msk [vmem:[%s39] sm:$0x1] %vm38, %v37
    %s41 = scalar_lea.vmem %s1, 35
    %42 = vst.msk [vmem:[%s41] sm:$0x2] %vm38, %v37
    %v43 = vld [vmem:[#allocation0] sm:$0x3]
    %44 = vrot.lane.b32.xlu0 %v43, 123
    %v45 = vpop.permute.xlu0 %44
    %vm46 = vcmask 7168
    %s47 = scalar_lea.vmem %s1, 5
    %48 = vst.msk [vmem:[%s47] sm:$0x1] %vm46, %v45
    %s49 = scalar_lea.vmem %s1, 36
    %50 = vst.msk [vmem:[%s49] sm:$0x2] %vm46, %v45
    %v51 = vld [vmem:[#allocation0] sm:$0x3]
    %52 = vrot.lane.b32.xlu0 %v51, 122
    %v53 = vpop.permute.xlu0 %52
    %vm54 = vcmask 7168
    %s55 = scalar_lea.vmem %s1, 6
    %56 = vst.msk [vmem:[%s55] sm:$0x1] %vm54, %v53
    %s57 = scalar_lea.vmem %s1, 37
    %58 = vst.msk [vmem:[%s57] sm:$0x2] %vm54, %v53
    %v59 = vld [vmem:[#allocation0] sm:$0x3]
    %60 = vrot.lane.b32.xlu0 %v59, 121
    %v61 = vpop.permute.xlu0 %60
    %vm62 = vcmask 7168
    %s63 = scalar_lea.vmem %s1, 7
    %64 = vst.msk [vmem:[%s63] sm:$0x1] %vm62, %v61
    %s65 = scalar_lea.vmem %s1, 38
    %66 = vst.msk [vmem:[%s65] sm:$0x2] %vm62, %v61
    %v67 = vld [vmem:[#allocation0] sm:$0x3]
    %68 = vrot.lane.b32.xlu0 %v67, 120
    %v69 = vpop.permute.xlu0 %68
    %vm70 = vcmask 7168
    %s71 = scalar_lea.vmem %s1, 8
    %72 = vst.msk [vmem:[%s71] sm:$0x1] %vm70, %v69
    %s73 = scalar_lea.vmem %s1, 39
    %74 = vst.msk [vmem:[%s73] sm:$0x2] %vm70, %v69
    %v75 = vld [vmem:[#allocation0] sm:$0x3]
    %76 = vrot.lane.b32.xlu0 %v75, 119
    %v77 = vpop.permute.xlu0 %76
    %vm78 = vcmask 7168
    %s79 = scalar_lea.vmem %s1, 9
    %80 = vst.msk [vmem:[%s79] sm:$0x1] %vm78, %v77
    %s81 = scalar_lea.vmem %s1, 40
    %82 = vst.msk [vmem:[%s81] sm:$0x2] %vm78, %v77
    %v83 = vld [vmem:[#allocation0] sm:$0x3]
    %84 = vrot.lane.b32.xlu0 %v83, 118
    %v85 = vpop.permute.xlu0 %84
    %vm86 = vcmask 7168
    %s87 = scalar_lea.vmem %s1, 10
    %88 = vst.msk [vmem:[%s87] sm:$0x1] %vm86, %v85
    %s89 = scalar_lea.vmem %s1, 41
    %90 = vst.msk [vmem:[%s89] sm:$0x2] %vm86, %v85
    %v91 = vld [vmem:[#allocation0] sm:$0x3]
    %92 = vrot.lane.b32.xlu0 %v91, 117
    %v93 = vpop.permute.xlu0 %92
    %vm94 = vcmask 7168
    %s95 = scalar_lea.vmem %s1, 11
    %96 = vst.msk [vmem:[%s95] sm:$0x1] %vm94, %v93
    %s97 = scalar_lea.vmem %s1, 42
    %98 = vst.msk [vmem:[%s97] sm:$0x2] %vm94, %v93
    %v99 = vld [vmem:[#allocation0] sm:$0x3]
    %100 = vrot.lane.b32.xlu0 %v99, 116
    %v101 = vpop.permute.xlu0 %100
    %vm102 = vcmask 7168
    %s103 = scalar_lea.vmem %s1, 12
    %104 = vst.msk [vmem:[%s103] sm:$0x1] %vm102, %v101
    %s105 = scalar_lea.vmem %s1, 43
    %106 = vst.msk [vmem:[%s105] sm:$0x2] %vm102, %v101
    %v107 = vld [vmem:[#allocation0] sm:$0x3]
    %108 = vrot.lane.b32.xlu0 %v107, 115
    %v109 = vpop.permute.xlu0 %108
    %vm110 = vcmask 7168
    %s111 = scalar_lea.vmem %s1, 13
    %112 = vst.msk [vmem:[%s111] sm:$0x1] %vm110, %v109
    %s113 = scalar_lea.vmem %s1, 44
    %114 = vst.msk [vmem:[%s113] sm:$0x2] %vm110, %v109
    %v115 = vld [vmem:[#allocation0] sm:$0x3]
    %116 = vrot.lane.b32.xlu0 %v115, 114
    %v117 = vpop.permute.xlu0 %116
    %vm118 = vcmask 7168
    %s119 = scalar_lea.vmem %s1, 14
    %120 = vst.msk [vmem:[%s119] sm:$0x1] %vm118, %v117
    %s121 = scalar_lea.vmem %s1, 45
    %122 = vst.msk [vmem:[%s121] sm:$0x2] %vm118, %v117
    %v123 = vld [vmem:[#allocation0] sm:$0x3]
    %124 = vrot.lane.b32.xlu0 %v123, 113
    %v125 = vpop.permute.xlu0 %124
    %vm126 = vcmask 7168
    %s127 = scalar_lea.vmem %s1, 15
    %128 = vst.msk [vmem:[%s127] sm:$0x1] %vm126, %v125
    %s129 = scalar_lea.vmem %s1, 46
    %130 = vst.msk [vmem:[%s129] sm:$0x2] %vm126, %v125
    %v131 = vld [vmem:[#allocation0] sm:$0x3]
    %132 = vrot.lane.b32.xlu0 %v131, 112
    %v133 = vpop.permute.xlu0 %132
    %vm134 = vcmask 7168
    %s135 = scalar_lea.vmem %s1, 16
    %136 = vst.msk [vmem:[%s135] sm:$0x1] %vm134, %v133
    %s137 = scalar_lea.vmem %s1, 47
    %138 = vst.msk [vmem:[%s137] sm:$0x2] %vm134, %v133
    %v139 = vld [vmem:[#allocation0] sm:$0x3]
    %140 = vrot.lane.b32.xlu0 %v139, 111
    %v141 = vpop.permute.xlu0 %140
    %vm142 = vcmask 7168
    %s143 = scalar_lea.vmem %s1, 17
    %144 = vst.msk [vmem:[%s143] sm:$0x1] %vm142, %v141
    %s145 = scalar_lea.vmem %s1, 48
    %146 = vst.msk [vmem:[%s145] sm:$0x2] %vm142, %v141
    %v147 = vld [vmem:[#allocation0] sm:$0x3]
    %148 = vrot.lane.b32.xlu0 %v147, 110
    %v149 = vpop.permute.xlu0 %148
    %vm150 = vcmask 7168
    %s151 = scalar_lea.vmem %s1, 18
    %152 = vst.msk [vmem:[%s151] sm:$0x1] %vm150, %v149
    %s153 = scalar_lea.vmem %s1, 49
    %154 = vst.msk [vmem:[%s153] sm:$0x2] %vm150, %v149
    %v155 = vld [vmem:[#allocation0] sm:$0x3]
    %156 = vrot.lane.b32.xlu0 %v155, 109
    %v157 = vpop.permute.xlu0 %156
    %vm158 = vcmask 7168
    %s159 = scalar_lea.vmem %s1, 19
    %160 = vst.msk [vmem:[%s159] sm:$0x1] %vm158, %v157
    %s161 = scalar_lea.vmem %s1, 50
    %162 = vst.msk [vmem:[%s161] sm:$0x2] %vm158, %v157
    %v163 = vld [vmem:[#allocation0] sm:$0x3]
    %164 = vrot.lane.b32.xlu0 %v163, 108
    %v165 = vpop.permute.xlu0 %164
    %vm166 = vcmask 7168
    %s167 = scalar_lea.vmem %s1, 20
    %168 = vst.msk [vmem:[%s167] sm:$0x1] %vm166, %v165
    %s169 = scalar_lea.vmem %s1, 51
    %170 = vst.msk [vmem:[%s169] sm:$0x2] %vm166, %v165
    %v171 = vld [vmem:[#allocation0] sm:$0x3]
    %172 = vrot.lane.b32.xlu0 %v171, 107
    %v173 = vpop.permute.xlu0 %172
    %vm174 = vcmask 7168
    %s175 = scalar_lea.vmem %s1, 21
    %176 = vst.msk [vmem:[%s175] sm:$0x1] %vm174, %v173
    %s177 = scalar_lea.vmem %s1, 52
    %178 = vst.msk [vmem:[%s177] sm:$0x2] %vm174, %v173
    %v179 = vld [vmem:[#allocation0] sm:$0x3]
    %180 = vrot.lane.b32.xlu0 %v179, 106
    %v181 = vpop.permute.xlu0 %180
    %vm182 = vcmask 7168
    %s183 = scalar_lea.vmem %s1, 22
    %184 = vst.msk [vmem:[%s183] sm:$0x1] %vm182, %v181
    %s185 = scalar_lea.vmem %s1, 53
    %186 = vst.msk [vmem:[%s185] sm:$0x2] %vm182, %v181
    %v187 = vld [vmem:[#allocation0] sm:$0x3]
    %188 = vrot.lane.b32.xlu0 %v187, 105
    %v189 = vpop.permute.xlu0 %188
    %vm190 = vcmask 7168
    %s191 = scalar_lea.vmem %s1, 23
    %192 = vst.msk [vmem:[%s191] sm:$0x1] %vm190, %v189
    %s193 = scalar_lea.vmem %s1, 54
    %194 = vst.msk [vmem:[%s193] sm:$0x2] %vm190, %v189
    %v195 = vld [vmem:[#allocation0] sm:$0x3]
    %196 = vrot.lane.b32.xlu0 %v195, 104
    %v197 = vpop.permute.xlu0 %196
    %vm198 = vcmask 7168
    %s199 = scalar_lea.vmem %s1, 24
    %200 = vst.msk [vmem:[%s199] sm:$0x1] %vm198, %v197
    %s201 = scalar_lea.vmem %s1, 55
    %202 = vst.msk [vmem:[%s201] sm:$0x2] %vm198, %v197
    %v203 = vld [vmem:[#allocation0] sm:$0x3]
    %204 = vrot.lane.b32.xlu0 %v203, 103
    %v205 = vpop.permute.xlu0 %204
    %vm206 = vcmask 7168
    %s207 = scalar_lea.vmem %s1, 25
    %208 = vst.msk [vmem:[%s207] sm:$0x1] %vm206, %v205
    %s209 = scalar_lea.vmem %s1, 56
    %210 = vst.msk [vmem:[%s209] sm:$0x2] %vm206, %v205
    %v211 = vld [vmem:[#allocation0] sm:$0x3]
    %212 = vrot.lane.b32.xlu0 %v211, 102
    %v213 = vpop.permute.xlu0 %212
    %vm214 = vcmask 7168
    %s215 = scalar_lea.vmem %s1, 26
    %216 = vst.msk [vmem:[%s215] sm:$0x1] %vm214, %v213
    %s217 = scalar_lea.vmem %s1, 57
    %218 = vst.msk [vmem:[%s217] sm:$0x2] %vm214, %v213
    %v219 = vld [vmem:[#allocation0] sm:$0x3]
    %220 = vrot.lane.b32.xlu0 %v219, 101
    %v221 = vpop.permute.xlu0 %220
    %vm222 = vcmask 7168
    %s223 = scalar_lea.vmem %s1, 27
    %224 = vst.msk [vmem:[%s223] sm:$0x1] %vm222, %v221
    %s225 = scalar_lea.vmem %s1, 58
    %226 = vst.msk [vmem:[%s225] sm:$0x2] %vm222, %v221
    %v227 = vld [vmem:[#allocation0] sm:$0x3]
    %228 = vrot.lane.b32.xlu0 %v227, 100
    %v229 = vpop.permute.xlu0 %228
    %vm230 = vcmask 7168
    %s231 = scalar_lea.vmem %s1, 28
    %232 = vst.msk [vmem:[%s231] sm:$0x1] %vm230, %v229
    %s233 = scalar_lea.vmem %s1, 59
    %234 = vst.msk [vmem:[%s233] sm:$0x2] %vm230, %v229
    %v235 = vld [vmem:[#allocation0] sm:$0x3]
    %236 = vrot.lane.b32.xlu0 %v235, 99
    %v237 = vpop.permute.xlu0 %236
    %vm238 = vcmask 7168
    %s239 = scalar_lea.vmem %s1, 29
    %240 = vst.msk [vmem:[%s239] sm:$0x1] %vm238, %v237
    %s241 = scalar_lea.vmem %s1, 60
    %242 = vst.msk [vmem:[%s241] sm:$0x2] %vm238, %v237
    %v243 = vld [vmem:[#allocation0] sm:$0x3]
    %244 = vrot.lane.b32.xlu0 %v243, 98
    %v245 = vpop.permute.xlu0 %244
    %vm246 = vcmask 7168
    %s247 = scalar_lea.vmem %s1, 30
    %248 = vst.msk [vmem:[%s247] sm:$0x1] %vm246, %v245
    %s249 = scalar_lea.vmem %s1, 61
    %250 = vst.msk [vmem:[%s249] sm:$0x2] %vm246, %v245
    %v251 = vld [vmem:[#allocation0] sm:$0x3]
    %252 = vrot.lane.b32.xlu0 %v251, 97
    %v253 = vpop.permute.xlu0 %252
    %vm254 = vcmask 7168
    %s255 = scalar_lea.vmem %s1, 31
    %256 = vst.msk [vmem:[%s255] sm:$0x1] %vm254, %v253
    %s257 = scalar_lea.vmem %s1, 62
    %258 = vst.msk [vmem:[%s257] sm:$0x2] %vm254, %v253

// kernel: tile.38
$region0: #{tile.38}
  #allocation0 [shape = 's32[1]{0}', space=sflag, size = 0x4, scoped, tag = 'scoped memory for tile.38']
  %s0 = inlined_call_operand.vmem [shape: f32[4], index: 0, kind: input, shape index: {}]
  %s1 = inlined_call_operand.vmem [shape: f32[2,4], index: 1, kind: output, shape index: {}]
  // Predicated region
  $region2: #{tile.38} parent=0 // pred_check
    _
  $region3: #{tile.38} parent=0 // pred_check_branch
    %3 = sbr.rel (0) target = $region5
  $region4: #{tile.38} parent=0 // pred_region
    _
  $region5: #{tile.38} parent=0 // pred_fallthru
    _
  %v4 = vld [vmem:[%s0] ss:$0 sm:$0xff]
  %5 = vst [vmem:[%s1] sm:$0x3] %v4

// kernel: tile.0
$region0: #{tile.0}
  %s0 = inlined_call_operand.vmem [shape: f32[2,4], index: 0, kind: input, shape index: {}]
  %s1 = inlined_call_operand.vmem [shape: f32[8,1], index: 1, kind: output, shape index: {}]
  $region1: #{tile.0} parent=0
    #allocation0 [shape = 'u8[4096]{0}', space=vmem, size = 0x1000, scoped, tag = 'scoped mem for input reshape']
    %s3 = sshllo.u32 0, 2
    %v4 = vld [vmem:[%s0] sm:%s3]
    %5 = vst [vmem:[#allocation0] sm:%s3] %v4
    %v6 = vld [vmem:[#allocation0] sm:$0x3]
    %vm7 = vcmask 7168
    %8 = vst.msk [vmem:[%s1] ss:$4 sm:$0x3] %vm7, %v6
    %v9 = vld [vmem:[#allocation0] sm:$0x3]
    %10 = vrot.lane.b32.xlu0 %v9, 127
    %v11 = vpop.permute.xlu0 %10
    %vm12 = vcmask 7168
    %s13 = scalar_lea.vmem %s1, 1
    %14 = vst.msk [vmem:[%s13] ss:$4 sm:$0x3] %vm12, %v11
    %v15 = vld [vmem:[#allocation0] sm:$0x3]
    %16 = vrot.lane.b32.xlu0 %v15, 126
    %v17 = vpop.permute.xlu0 %16
    %vm18 = vcmask 7168
    %s19 = scalar_lea.vmem %s1, 2
    %20 = vst.msk [vmem:[%s19] ss:$4 sm:$0x3] %vm18, %v17
    %v21 = vld [vmem:[#allocation0] sm:$0x3]
    %22 = vrot.lane.b32.xlu0 %v21, 125
    %v23 = vpop.permute.xlu0 %22
    %vm24 = vcmask 7168
    %s25 = scalar_lea.vmem %s1, 3
    %26 = vst.msk [vmem:[%s25] ss:$4 sm:$0x3] %vm24, %v23

// kernel: depthwise_nuisance_generator.1
$region0: #{depthwise_nuisance_generator.1}
  #allocation0 [shape = 'u32[]', space=smem, size = 0x4, offset = 0x4, fixed_abs, tag = 'smem constant byte address 0x4 - core index']
  #allocation1 [shape = 'u32[144,128]{1,0:T(1,128)}', space=vmem, size = 0x12000, scoped, tag = 'internal scratch']
  %s0 = inlined_call_operand.vmem [shape: f32[16,128], index: 0, kind: input, shape index: {}]
  %s1 = inlined_call_operand.vmem [shape: f32[8,71], index: 1, kind: input, shape index: {}]
  %s2 = inlined_call_operand.vmem [shape: f32[64,75], index: 2, kind: input, shape index: {}]
  %s3 = inlined_call_operand.hbm [shape: f32[16,128], index: 3, kind: output, shape index: {}]
  %s4 = sld [smem:[#allocation0]]
  $region45: #{depthwise_nuisance_generator.1} parent=0
    _
  %s6 = ssub.s32 1, %s4
  %s7 = scalar_select 0, %s6, %s4
  $region1: #{depthwise_nuisance_generator.1} parent=0
    #allocation2 [shape = 'u8[8192]{0}', space=vmem, size = 0x2000, scoped, tag = 'output window, operand 0']
    #allocation3 [shape = 's32[2]{0}', space=sflag, size = 0x8, scoped, tag = 'scoped memory for depthwise_nuisance_generator.1']
    %8 = vsyncpa [#allocation3], 0
    %s9 = scalar_lea.sflag [#allocation3], 1
    %10 = vsyncpa %s9, 0
    loop: start=0, step=1, limit=4
    $region2: #{depthwise_nuisance_generator.1} parent=1 // loop_pre_header
      _
    $region3: #{depthwise_nuisance_generator.1} parent=1 // loop_header
      %s12 = sphi 0, %s16
      %p13 = scmp.ge.s32.totalorder %s12, 4
      %s22 = sphi 0, %s24
      %s25 = sphi 0, %s22
      %s26 = sphi 0, %s25
      %s42 = sphi 0, %s26
      %s46 = sphi 0, %s46
      %s48 = sphi 0, %s46
      %s49 = sphi 0, %s48
      %s63 = sphi 0, %s49
      %s67 = sphi 0, %s67
      %s69 = sphi 0, %s67
      %s70 = sphi 0, %s69
      %s84 = sphi 0, %s70
      %s90 = sphi 0, %s92
      %s93 = sphi 0, %s90
      %s94 = sphi 0, %s93
      %s110 = sphi 0, %s94
    $region4: #{depthwise_nuisance_generator.1} parent=1 // loop_header_branch
      %15 = sbr.rel (%p13) target = $region8
    $region5: #{depthwise_nuisance_generator.1} parent=1 // loop_body
      %s17 = ssub.s32 %s12, 1
      %s18 = ssub.s32 %s12, 2
      %s19 = sadd.s32 %s12, 1
      %s20 = ssub.s32 %s12, %s19
      %p21 = scmp.eq.s32.totalorder %s20, 0
      %s23 = sadd.s32 %s22, 1
      %s24 = scalar_select %p21, %s22, %s23
      %p27 = pneg %p21
      %p28 = scmp.eq.s32.totalorder %s12, 1
      %p29 = por %p27, %p28
      %p30 = scmp.ne.s32.totalorder %s22, %s25
      %p31 = scmp.eq.s32.totalorder %s12, 0
      %p32 = por %p30, %p31
      %p33 = scmp.ne.s32.totalorder %s22, %s25
      %p34 = scmp.eq.s32.totalorder %s17, 1
      %p35 = por %p33, %p34
      %p36 = scmp.ne.s32.totalorder %s25, %s26
      %p37 = scmp.eq.s32.totalorder %s17, 0
      %p38 = por %p36, %p37
      %p39 = scmp.ne.s32.totalorder %s25, %s26
      %p40 = scmp.eq.s32.totalorder %s18, 1
      %p41 = por %p39, %p40
      %p43 = scmp.ne.s32.totalorder %s26, %s42
      %p44 = scmp.eq.s32.totalorder %s18, 0
      %p45 = por %p43, %p44
      %s47 = sadd.s32 %s46, 1
      %p50 = scmp.eq.s32.totalorder %s12, 1
      %p51 = scmp.ne.s32.totalorder %s46, %s48
      %p52 = scmp.eq.s32.totalorder %s12, 0
      %p53 = por %p51, %p52
      %p54 = scmp.ne.s32.totalorder %s46, %s48
      %p55 = scmp.eq.s32.totalorder %s17, 1
      %p56 = por %p54, %p55
      %p57 = scmp.ne.s32.totalorder %s48, %s49
      %p58 = scmp.eq.s32.totalorder %s17, 0
      %p59 = por %p57, %p58
      %p60 = scmp.ne.s32.totalorder %s48, %s49
      %p61 = scmp.eq.s32.totalorder %s18, 1
      %p62 = por %p60, %p61
      %p64 = scmp.ne.s32.totalorder %s49, %s63
      %p65 = scmp.eq.s32.totalorder %s18, 0
      %p66 = por %p64, %p65
      %s68 = sadd.s32 %s67, 1
      %p71 = scmp.eq.s32.totalorder %s12, 1
      %p72 = scmp.ne.s32.totalorder %s67, %s69
      %p73 = scmp.eq.s32.totalorder %s12, 0
      %p74 = por %p72, %p73
      %p75 = scmp.ne.s32.totalorder %s67, %s69
      %p76 = scmp.eq.s32.totalorder %s17, 1
      %p77 = por %p75, %p76
      %p78 = scmp.ne.s32.totalorder %s69, %s70
      %p79 = scmp.eq.s32.totalorder %s17, 0
      %p80 = por %p78, %p79
      %p81 = scmp.ne.s32.totalorder %s69, %s70
      %p82 = scmp.eq.s32.totalorder %s18, 1
      %p83 = por %p81, %p82
      %p85 = scmp.ne.s32.totalorder %s70, %s84
      %p86 = scmp.eq.s32.totalorder %s18, 0
      %p87 = por %p85, %p86
      %s88 = ssub.s32 %s12, %s19
      %p89 = scmp.eq.s32.totalorder %s88, 0
      %s91 = sadd.s32 %s90, 1
      %s92 = scalar_select %p89, %s90, %s91
      %p95 = pneg %p89
      %p96 = scmp.eq.s32.totalorder %s12, 1
      %p97 = por %p95, %p96
      %p98 = scmp.ne.s32.totalorder %s90, %s93
      %p99 = scmp.eq.s32.totalorder %s12, 0
      %p100 = por %p98, %p99
      %p101 = scmp.ne.s32.totalorder %s90, %s93
      %p102 = scmp.eq.s32.totalorder %s17, 1
      %p103 = por %p101, %p102
      %p104 = scmp.ne.s32.totalorder %s93, %s94
      %p105 = scmp.eq.s32.totalorder %s17, 0
      %p106 = por %p104, %p105
      %p107 = scmp.ne.s32.totalorder %s93, %s94
      %p108 = scmp.eq.s32.totalorder %s18, 1
      %p109 = por %p107, %p108
      %p111 = scmp.ne.s32.totalorder %s94, %s110
      %p112 = scmp.eq.s32.totalorder %s18, 0
      %p113 = por %p111, %p112
      %p114 = scmp.le.s32.totalorder 1, %s12
      %p115 = scmp.lt.s32.totalorder %s12, 3
      %p116 = pnand %p114, %p115
      %p117 = pneg %p116
      // Predicated region
      $region9: #{depthwise_nuisance_generator.1} parent=5 // pred_check
        _
      $region10: #{depthwise_nuisance_generator.1} parent=5 // pred_check_branch
        %119 = sbr.rel (%p116) target = $region12
      $region11: #{depthwise_nuisance_generator.1} parent=5 // pred_region
        %s120 = ssub.s32 %s12, 1
        // Predicated region
        $region13: #{depthwise_nuisance_generator.1} parent=11 // pred_check
          %p121 = pneg %p59
        $region14: #{depthwise_nuisance_generator.1} parent=11 // pred_check_branch
          %123 = sbr.rel (%p121) target = $region16
        $region15: #{depthwise_nuisance_generator.1} parent=11 // pred_region
          _
        $region16: #{depthwise_nuisance_generator.1} parent=11 // pred_fallthru
          _
        // Predicated region
        $region17: #{depthwise_nuisance_generator.1} parent=11 // pred_check
          %p124 = pneg %p80
        $region18: #{depthwise_nuisance_generator.1} parent=11 // pred_check_branch
          %126 = sbr.rel (%p124) target = $region20
        $region19: #{depthwise_nuisance_generator.1} parent=11 // pred_region
          _
        $region20: #{depthwise_nuisance_generator.1} parent=11 // pred_fallthru
          _
      $region12: #{depthwise_nuisance_generator.1} parent=5 // pred_fallthru
        _
      %p127 = scmp.lt.s32.totalorder %s12, 2
      // Predicated region
      $region21: #{depthwise_nuisance_generator.1} parent=5 // pred_check
        %p128 = pneg %p127
      $region22: #{depthwise_nuisance_generator.1} parent=5 // pred_check_branch
        %130 = sbr.rel (%p128) target = $region24
      $region23: #{depthwise_nuisance_generator.1} parent=5 // pred_region
        // Predicated region
        $region25: #{depthwise_nuisance_generator.1} parent=23 // pred_check
          %p131 = pneg %p32
        $region26: #{depthwise_nuisance_generator.1} parent=23 // pred_check_branch
          %133 = sbr.rel (%p131) target = $region28
        $region27: #{depthwise_nuisance_generator.1} parent=23 // pred_region
          %p134 = scmp.lt.s32.totalorder %s12, 1
          %s135 = scalar_select %p134, %s12, 1
          %s136 = smul.addr %s135, 8
          %s137 = scalar_lea.vmem %s0, %s136
        $region28: #{depthwise_nuisance_generator.1} parent=23 // pred_fallthru
          _
      $region24: #{depthwise_nuisance_generator.1} parent=5 // pred_fallthru
        _
      %p138 = scmp.le.s32.totalorder 1, %s12
      %p139 = scmp.lt.s32.totalorder %s12, 3
      %p140 = pnand %p138, %p139
      %p141 = pneg %p140
      // Predicated region
      $region29: #{depthwise_nuisance_generator.1} parent=5 // pred_check
        _
      $region30: #{depthwise_nuisance_generator.1} parent=5 // pred_check_branch
        %143 = sbr.rel (%p140) target = $region32
      $region31: #{depthwise_nuisance_generator.1} parent=5 // pred_region
        %s144 = ssub.s32 %s12, 1
        %p145 = scmp.lt.s32.totalorder %s17, 1
        %s146 = scalar_select %p145, %s17, 1
        %s147 = smul.addr %s146, 8
        %s148 = scalar_lea.vmem %s0, %s147
        %p149 = pneg %p38
        %p150 = pneg %p35
        %p151 = pneg %p59
        %p152 = pneg %p56
        %p153 = pneg %p80
        %p154 = pneg %p77
        %p155 = pneg %p106
        %p156 = pneg %p103
        %s157 = sand.u32 %s93, 1
        %s158 = scalar_lea.sflag [#allocation3], %s157
        %s159 = sand.u32 %s93, 1
        %s160 = smul.addr %s159, 8
        %s161 = scalar_lea.vmem [#allocation2], %s160
        %p162 = scmp.lt.s32.totalorder %s17, 1
        %s163 = scalar_select %p162, %s17, 1
        %s164 = smul.addr %s163, 8
        %s165 = scalar_lea.vmem %s0, %s164
        %v166 = vld [vmem:[%s165] sm:$0xff]
        %v167 = vld [vmem:[%s1] sm:$0xff]
        %v168 = vld [vmem:[%s2] sm:$0xff]
        %v169 = vld [vmem:[%s2 + $0x8] sm:$0xff]
        %v170 = vld [vmem:[%s2 + $0x10] sm:$0xff]
        %v171 = vld [vmem:[%s2 + $0x18] sm:$0xff]
        %v172 = vld [vmem:[%s2 + $0x20] sm:$0xff]
        %v173 = vld [vmem:[%s2 + $0x28] sm:$0xff]
        %v174 = vld [vmem:[%s2 + $0x30] sm:$0xff]
        %v175 = vld [vmem:[%s2 + $0x38] sm:$0xff]
        %177 = vrot.lane.b32.xlu0 %v166, 2
        %v178 = vpop.permute.xlu0 %177
        %vm180 = vcmask 15360
        %v181 = vsel %vm180, 0.0, %v178
        %v182 = vsel %vm180, %v178, 0.0
        %184 = vset.pattern.permute.xlu0 64
        %185 = vperm.xlu0 %184, %v167
        %v186 = vpop.permute.xlu0 %185
        %v188 = vmul.f32 %v181, %v186
        %189 = vset.pattern.permute.xlu0 65
        %190 = vperm.xlu0 %189, %v167
        %v191 = vpop.permute.xlu0 %190
        %v193 = vmul.f32 %v181, %v191
        %v194 = vmul.f32 %v182, %v191
        %197 = vrot.lane.b32.xlu0 %v193, 127
        %v198 = vpop.permute.xlu0 %197
        %199 = vrot.lane.b32.xlu0 %v194, 127
        %v200 = vpop.permute.xlu0 %199
        %vm201 = vcmask 1039360
        %v202 = vsel %vm201, %v198, %v200
        %v204 = vadd.f32 %v188, %v202
        %205 = vset.pattern.permute.xlu0 66
        %206 = vperm.xlu0 %205, %v167
        %v207 = vpop.permute.xlu0 %206
        %v209 = vmul.f32 %v181, %v207
        %v210 = vmul.f32 %v182, %v207
        %213 = vrot.lane.b32.xlu0 %v209, 126
        %v214 = vpop.permute.xlu0 %213
        %215 = vrot.lane.b32.xlu0 %v210, 126
        %v216 = vpop.permute.xlu0 %215
        %vm217 = vcmask 1031168
        %v218 = vsel %vm217, %v214, %v216
        %v220 = vadd.f32 %v204, %v218
        %221 = vset.pattern.permute.xlu0 67
        %222 = vperm.xlu0 %221, %v167
        %v223 = vpop.permute.xlu0 %222
        %v225 = vmul.f32 %v181, %v223
        %v226 = vmul.f32 %v182, %v223
        %229 = vrot.lane.b32.xlu0 %v225, 125
        %v230 = vpop.permute.xlu0 %229
        %231 = vrot.lane.b32.xlu0 %v226, 125
        %v232 = vpop.permute.xlu0 %231
        %vm233 = vcmask 1022976
        %v234 = vsel %vm233, %v230, %v232
        %v236 = vadd.f32 %v220, %v234
        %237 = vset.pattern.permute.xlu0 68
        %238 = vperm.xlu0 %237, %v167
        %v239 = vpop.permute.xlu0 %238
        %v241 = vmul.f32 %v181, %v239
        %v242 = vmul.f32 %v182, %v239
        %245 = vrot.lane.b32.xlu0 %v241, 124
        %v246 = vpop.permute.xlu0 %245
        %247 = vrot.lane.b32.xlu0 %v242, 124
        %v248 = vpop.permute.xlu0 %247
        %vm249 = vcmask 1014784
        %v250 = vsel %vm249, %v246, %v248
        %v252 = vadd.f32 %v236, %v250
        %253 = vset.pattern.permute.xlu0 69
        %254 = vperm.xlu0 %253, %v167
        %v255 = vpop.permute.xlu0 %254
        %v257 = vadd.f32 %v252, %v255
        %v258 = vmax.f32 %v257, 0.0
        %260 = vset.pattern.permute.xlu0 72
        %261 = vperm.xlu0 %260, %v168
        %v262 = vpop.permute.xlu0 %261
        %265 = vset.pattern.permute.xlu0 72
        %266 = vperm.xlu0 %265, %v169
        %v267 = vpop.permute.xlu0 %266
        %270 = vset.pattern.permute.xlu0 72
        %271 = vperm.xlu0 %270, %v170
        %v272 = vpop.permute.xlu0 %271
        %275 = vset.pattern.permute.xlu0 72
        %276 = vperm.xlu0 %275, %v171
        %v277 = vpop.permute.xlu0 %276
        %280 = vset.pattern.permute.xlu0 72
        %281 = vperm.xlu0 %280, %v172
        %v282 = vpop.permute.xlu0 %281
        %285 = vset.pattern.permute.xlu0 72
        %286 = vperm.xlu0 %285, %v173
        %v287 = vpop.permute.xlu0 %286
        %290 = vset.pattern.permute.xlu0 72
        %291 = vperm.xlu0 %290, %v174
        %v292 = vpop.permute.xlu0 %291
        %295 = vset.pattern.permute.xlu0 72
        %296 = vperm.xlu0 %295, %v175
        %v297 = vpop.permute.xlu0 %296
        %vm299 = vcmask 64512
        %v300 = vsel %vm299, %v168, 0
        %v302 = vsel %vm299, %v169, 0
        %v304 = vsel %vm299, %v170, 0
        %v306 = vsel %vm299, %v171, 0
        %v308 = vsel %vm299, %v172, 0
        %v310 = vsel %vm299, %v173, 0
        %v312 = vsel %vm299, %v174, 0
        %v314 = vsel %vm299, %v175, 0
        %316 = vmatprep.subr.mxu0 0.0
        %317 = vmatpush1.msra.mxu0 %v258
        %318 = vmatprep.subr.mxu0 0.0
        %319 = vmatpush1.msra.mxu0 0.0
        %320 = vmatprep.subr.mxu0 0.0
        %321 = vmatpush1.msra.mxu0 0.0
        %322 = vmatprep.subr.mxu0 0.0
        %323 = vmatpush1.msra.mxu0 0.0
        %324 = vmatprep.subr.mxu0 0.0
        %325 = vmatpush1.msra.mxu0 0.0
        %326 = vmatprep.subr.mxu0 0.0
        %327 = vmatpush1.msra.mxu0 0.0
        %328 = vmatprep.subr.mxu0 0.0
        %329 = vmatpush1.msra.mxu0 0.0
        %330 = vmatprep.subr.mxu0 0.0
        %331 = vmatpush1.msra.mxu0 0.0
        %332 = vmatprep.subr.mxu0 0.0
        %333 = vmatpush1.msra.mxu0 0.0
        %334 = vmatprep.subr.mxu0 0.0
        %335 = vmatpush1.msra.mxu0 0.0
        %336 = vmatprep.subr.mxu0 0.0
        %337 = vmatpush1.msra.mxu0 0.0
        %338 = vmatprep.subr.mxu0 0.0
        %339 = vmatpush1.msra.mxu0 0.0
        %340 = vmatprep.subr.mxu0 0.0
        %341 = vmatpush1.msra.mxu0 0.0
        %342 = vmatprep.subr.mxu0 0.0
        %343 = vmatpush1.msra.mxu0 0.0
        %344 = vmatprep.subr.mxu0 0.0
        %345 = vmatpush1.msra.mxu0 0.0
        %346 = vmatprep.subr.mxu0 0.0
        %347 = vmatpush1.msra.mxu0 0.0
        %348 = vmatprep.subr.mxu0 0.0
        %349 = vmatpush1.msra.mxu0 0.0
        %350 = vmatprep.subr.mxu0 0.0
        %351 = vmatpush1.msra.mxu0 0.0
        %352 = vmatprep.subr.mxu0 0.0
        %353 = vmatpush1.msra.mxu0 0.0
        %354 = vmatprep.subr.mxu0 0.0
        %355 = vmatpush1.msra.mxu0 0.0
        %356 = vmatprep.subr.mxu0 0.0
        %357 = vmatpush1.msra.mxu0 0.0
        %358 = vmatprep.subr.mxu0 0.0
        %359 = vmatpush1.msra.mxu0 0.0
        %360 = vmatprep.subr.mxu0 0.0
        %361 = vmatpush1.msra.mxu0 0.0
        %362 = vmatprep.subr.mxu0 0.0
        %363 = vmatpush1.msra.mxu0 0.0
        %364 = vmatprep.subr.mxu0 0.0
        %365 = vmatpush1.msra.mxu0 0.0
        %366 = vmatprep.subr.mxu0 0.0
        %367 = vmatpush1.msra.mxu0 0.0
        %368 = vmatprep.subr.mxu0 0.0
        %369 = vmatpush1.msra.mxu0 0.0
        %370 = vmatprep.subr.mxu0 0.0
        %371 = vmatpush1.msra.mxu0 0.0
        %372 = vmatprep.subr.mxu0 0.0
        %373 = vmatpush1.msra.mxu0 0.0
        %374 = vmatprep.subr.mxu0 0.0
        %375 = vmatpush1.msra.mxu0 0.0
        %376 = vmatprep.subr.mxu0 0.0
        %377 = vmatpush1.msra.mxu0 0.0
        %378 = vmatprep.subr.mxu0 0.0
        %379 = vmatpush1.msra.mxu0 0.0
        %380 = vmatprep.mubr.f32.mxu0 0.0
        %381 = vmatmul.mubr.f32.gmra.mrb[0].mxu0 %v300
        %v382 = vpop.f32.mrb[0].mxu0
        %v383 = vadd.f32 %v262, %v382
        %v384 = vpop.f32.mrb[0].mxu0
        %385 = vmatprep.mubr.f32.mxu0 0.0
        %386 = vmatmul.mubr.f32.gmra.mrb[0].mxu0 %v302
        %v387 = vpop.f32.mrb[0].mxu0
        %v388 = vadd.f32 %v267, %v387
        %v389 = vpop.f32.mrb[0].mxu0
        %390 = vmatprep.mubr.f32.mxu0 0.0
        %391 = vmatmul.mubr.f32.gmra.mrb[0].mxu0 %v304
        %v392 = vpop.f32.mrb[0].mxu0
        %v393 = vadd.f32 %v272, %v392
        %v394 = vpop.f32.mrb[0].mxu0
        %395 = vmatprep.mubr.f32.mxu0 0.0
        %396 = vmatmul.mubr.f32.gmra.mrb[0].mxu0 %v306
        %v397 = vpop.f32.mrb[0].mxu0
        %v398 = vadd.f32 %v277, %v397
        %v399 = vpop.f32.mrb[0].mxu0
        %400 = vmatprep.mubr.f32.mxu0 0.0
        %401 = vmatmul.mubr.f32.gmra.mrb[0].mxu0 %v308
        %v402 = vpop.f32.mrb[0].mxu0
        %v403 = vadd.f32 %v282, %v402
        %v404 = vpop.f32.mrb[0].mxu0
        %405 = vmatprep.mubr.f32.mxu0 0.0
        %406 = vmatmul.mubr.f32.gmra.mrb[0].mxu0 %v310
        %v407 = vpop.f32.mrb[0].mxu0
        %v408 = vadd.f32 %v287, %v407
        %v409 = vpop.f32.mrb[0].mxu0
        %410 = vmatprep.mubr.f32.mxu0 0.0
        %411 = vmatmul.mubr.f32.gmra.mrb[0].mxu0 %v312
        %v412 = vpop.f32.mrb[0].mxu0
        %v413 = vadd.f32 %v292, %v412
        %v414 = vpop.f32.mrb[0].mxu0
        %415 = vmatprep.mubr.f32.mxu0 0.0
        %416 = vmatmul.mubr.f32.gmra.mrb[0].mxu0 %v314
        %v417 = vpop.f32.mrb[0].mxu0
        %v418 = vadd.f32 %v297, %v417
        %v419 = vpop.f32.mrb[0].mxu0
        %420 = vdwg.mxu0
        %421 = vrot.lane.b32.xlu0 %v168, 120
        %v422 = vpop.permute.xlu0 %421
        %423 = vrot.lane.b32.xlu0 %v169, 120
        %v424 = vpop.permute.xlu0 %423
        %425 = vrot.lane.b32.xlu0 %v170, 120
        %v426 = vpop.permute.xlu0 %425
        %427 = vrot.lane.b32.xlu0 %v171, 120
        %v428 = vpop.permute.xlu0 %427
        %429 = vrot.lane.b32.xlu0 %v172, 120
        %v430 = vpop.permute.xlu0 %429
        %431 = vrot.lane.b32.xlu0 %v173, 120
        %v432 = vpop.permute.xlu0 %431
        %433 = vrot.lane.b32.xlu0 %v174, 120
        %v434 = vpop.permute.xlu0 %433
        %435 = vrot.lane.b32.xlu0 %v175, 120
        %v436 = vpop.permute.xlu0 %435
        %vm437 = vcmask 523264
        %v438 = vsel %vm437, %v422, 0
        %v440 = vsel %vm437, %v424, 0
        %v442 = vsel %vm437, %v426, 0
        %v444 = vsel %vm437, %v428, 0
        %v446 = vsel %vm437, %v430, 0
        %v448 = vsel %vm437, %v432, 0
        %v450 = vsel %vm437, %v434, 0
        %v452 = vsel %vm437, %v436, 0
        %454 = vmatprep.subr.mxu0 0.0
        %455 = vmatpush1.msra.mxu0 %v383
        %456 = vmatprep.subr.mxu0 0.0
        %457 = vmatpush1.msra.mxu0 %v388
        %458 = vmatprep.subr.mxu0 0.0
        %459 = vmatpush1.msra.mxu0 %v393
        %460 = vmatprep.subr.mxu0 0.0
        %461 = vmatpush1.msra.mxu0 %v398
        %462 = vmatprep.subr.mxu0 0.0
        %463 = vmatpush1.msra.mxu0 %v403
        %464 = vmatprep.subr.mxu0 0.0
        %465 = vmatpush1.msra.mxu0 %v408
        %466 = vmatprep.subr.mxu0 0.0
        %467 = vmatpush1.msra.mxu0 %v413
        %468 = vmatprep.subr.mxu0 0.0
        %469 = vmatpush1.msra.mxu0 %v418
        %470 = vmatprep.subr.mxu0 0.0
        %471 = vmatpush1.msra.mxu0 0.0
        %472 = vmatprep.subr.mxu0 0.0
        %473 = vmatpush1.msra.mxu0 0.0
        %474 = vmatprep.subr.mxu0 0.0
        %475 = vmatpush1.msra.mxu0 0.0
        %476 = vmatprep.subr.mxu0 0.0
        %477 = vmatpush1.msra.mxu0 0.0
        %478 = vmatprep.subr.mxu0 0.0
        %479 = vmatpush1.msra.mxu0 0.0
        %480 = vmatprep.subr.mxu0 0.0
        %481 = vmatpush1.msra.mxu0 0.0
        %482 = vmatprep.subr.mxu0 0.0
        %483 = vmatpush1.msra.mxu0 0.0
        %484 = vmatprep.subr.mxu0 0.0
        %485 = vmatpush1.msra.mxu0 0.0
        %486 = vmatprep.subr.mxu0 0.0
        %487 = vmatpush1.msra.mxu0 0.0
        %488 = vmatprep.subr.mxu0 0.0
        %489 = vmatpush1.msra.mxu0 0.0
        %490 = vmatprep.subr.mxu0 0.0
        %491 = vmatpush1.msra.mxu0 0.0
        %492 = vmatprep.subr.mxu0 0.0
        %493 = vmatpush1.msra.mxu0 0.0
        %494 = vmatprep.subr.mxu0 0.0
        %495 = vmatpush1.msra.mxu0 0.0
        %496 = vmatprep.subr.mxu0 0.0
        %497 = vmatpush1.msra.mxu0 0.0
        %498 = vmatprep.subr.mxu0 0.0
        %499 = vmatpush1.msra.mxu0 0.0
        %500 = vmatprep.subr.mxu0 0.0
        %501 = vmatpush1.msra.mxu0 0.0
        %502 = vmatprep.subr.mxu0 0.0
        %503 = vmatpush1.msra.mxu0 0.0
        %504 = vmatprep.subr.mxu0 0.0
        %505 = vmatpush1.msra.mxu0 0.0
        %506 = vmatprep.subr.mxu0 0.0
        %507 = vmatpush1.msra.mxu0 0.0
        %508 = vmatprep.subr.mxu0 0.0
        %509 = vmatpush1.msra.mxu0 0.0
        %510 = vmatprep.subr.mxu0 0.0
        %511 = vmatpush1.msra.mxu0 0.0
        %512 = vmatprep.subr.mxu0 0.0
        %513 = vmatpush1.msra.mxu0 0.0
        %514 = vmatprep.subr.mxu0 0.0
        %515 = vmatpush1.msra.mxu0 0.0
        %516 = vmatprep.subr.mxu0 0.0
        %517 = vmatpush1.msra.mxu0 0.0
        %518 = vmatprep.mubr.f32.mxu0 0.0
        %519 = vmatmul.mubr.f32.gmra.mrb[0].mxu0 %v438
        %v520 = vpop.f32.mrb[0].mxu0
        %v521 = vadd.f32 0.0, %v520
        %v522 = vpop.f32.mrb[0].mxu0
        %523 = vmatprep.mubr.f32.mxu0 0.0
        %524 = vmatmul.mubr.f32.gmra.mrb[0].mxu0 %v440
        %v525 = vpop.f32.mrb[0].mxu0
        %v526 = vadd.f32 0.0, %v525
        %v527 = vpop.f32.mrb[0].mxu0
        %528 = vmatprep.mubr.f32.mxu0 0.0
        %529 = vmatmul.mubr.f32.gmra.mrb[0].mxu0 %v442
        %v530 = vpop.f32.mrb[0].mxu0
        %v531 = vadd.f32 0.0, %v530
        %v532 = vpop.f32.mrb[0].mxu0
        %533 = vmatprep.mubr.f32.mxu0 0.0
        %534 = vmatmul.mubr.f32.gmra.mrb[0].mxu0 %v444
        %v535 = vpop.f32.mrb[0].mxu0
        %v536 = vadd.f32 0.0, %v535
        %v537 = vpop.f32.mrb[0].mxu0
        %538 = vmatprep.mubr.f32.mxu0 0.0
        %539 = vmatmul.mubr.f32.gmra.mrb[0].mxu0 %v446
        %v540 = vpop.f32.mrb[0].mxu0
        %v541 = vadd.f32 0.0, %v540
        %v542 = vpop.f32.mrb[0].mxu0
        %543 = vmatprep.mubr.f32.mxu0 0.0
        %544 = vmatmul.mubr.f32.gmra.mrb[0].mxu0 %v448
        %v545 = vpop.f32.mrb[0].mxu0
        %v546 = vadd.f32 0.0, %v545
        %v547 = vpop.f32.mrb[0].mxu0
        %548 = vmatprep.mubr.f32.mxu0 0.0
        %549 = vmatmul.mubr.f32.gmra.mrb[0].mxu0 %v450
        %v550 = vpop.f32.mrb[0].mxu0
        %v551 = vadd.f32 0.0, %v550
        %v552 = vpop.f32.mrb[0].mxu0
        %553 = vmatprep.mubr.f32.mxu0 0.0
        %554 = vmatmul.mubr.f32.gmra.mrb[0].mxu0 %v452
        %v555 = vpop.f32.mrb[0].mxu0
        %v556 = vadd.f32 0.0, %v555
        %v557 = vpop.f32.mrb[0].mxu0
        %558 = vdwg.mxu0
        %v559 = vsub.f32 %v383, %v521
        %v560 = vsub.f32 %v388, %v526
        %v561 = vsub.f32 %v393, %v531
        %v562 = vsub.f32 %v398, %v536
        %v563 = vsub.f32 %v403, %v541
        %v564 = vsub.f32 %v408, %v546
        %v565 = vsub.f32 %v413, %v551
        %v566 = vsub.f32 %v418, %v556
        %v567 = vmul.f32 %v559, %v559
        %v568 = vmul.f32 %v560, %v560
        %v569 = vmul.f32 %v561, %v561
        %v570 = vmul.f32 %v562, %v562
        %v571 = vmul.f32 %v563, %v563
        %v572 = vmul.f32 %v564, %v564
        %v573 = vmul.f32 %v565, %v565
        %v574 = vmul.f32 %v566, %v566
        %575 = vmatprep.subr.mxu0 0.0
        %576 = vmatpush1.msra.mxu0 %v567
        %577 = vmatprep.subr.mxu0 0.0
        %578 = vmatpush1.msra.mxu0 %v568
        %579 = vmatprep.subr.mxu0 0.0
        %580 = vmatpush1.msra.mxu0 %v569
        %581 = vmatprep.subr.mxu0 0.0
        %582 = vmatpush1.msra.mxu0 %v570
        %583 = vmatprep.subr.mxu0 0.0
        %584 = vmatpush1.msra.mxu0 %v571
        %585 = vmatprep.subr.mxu0 0.0
        %586 = vmatpush1.msra.mxu0 %v572
        %587 = vmatprep.subr.mxu0 0.0
        %588 = vmatpush1.msra.mxu0 %v573
        %589 = vmatprep.subr.mxu0 0.0
        %590 = vmatpush1.msra.mxu0 %v574
        %591 = vmatprep.subr.mxu0 0.0
        %592 = vmatpush1.msra.mxu0 0.0
        %593 = vmatprep.subr.mxu0 0.0
        %594 = vmatpush1.msra.mxu0 0.0
        %595 = vmatprep.subr.mxu0 0.0
        %596 = vmatpush1.msra.mxu0 0.0
        %597 = vmatprep.subr.mxu0 0.0
        %598 = vmatpush1.msra.mxu0 0.0
        %599 = vmatprep.subr.mxu0 0.0
        %600 = vmatpush1.msra.mxu0 0.0
        %601 = vmatprep.subr.mxu0 0.0
        %602 = vmatpush1.msra.mxu0 0.0
        %603 = vmatprep.subr.mxu0 0.0
        %604 = vmatpush1.msra.mxu0 0.0
        %605 = vmatprep.subr.mxu0 0.0
        %606 = vmatpush1.msra.mxu0 0.0
        %607 = vmatprep.subr.mxu0 0.0
        %608 = vmatpush1.msra.mxu0 0.0
        %609 = vmatprep.subr.mxu0 0.0
        %610 = vmatpush1.msra.mxu0 0.0
        %611 = vmatprep.subr.mxu0 0.0
        %612 = vmatpush1.msra.mxu0 0.0
        %613 = vmatprep.subr.mxu0 0.0
        %614 = vmatpush1.msra.mxu0 0.0
        %615 = vmatprep.subr.mxu0 0.0
        %616 = vmatpush1.msra.mxu0 0.0
        %617 = vmatprep.subr.mxu0 0.0
        %618 = vmatpush1.msra.mxu0 0.0
        %619 = vmatprep.subr.mxu0 0.0
        %620 = vmatpush1.msra.mxu0 0.0
        %621 = vmatprep.subr.mxu0 0.0
        %622 = vmatpush1.msra.mxu0 0.0
        %623 = vmatprep.subr.mxu0 0.0
        %624 = vmatpush1.msra.mxu0 0.0
        %625 = vmatprep.subr.mxu0 0.0
        %626 = vmatpush1.msra.mxu0 0.0
        %627 = vmatprep.subr.mxu0 0.0
        %628 = vmatpush1.msra.mxu0 0.0
        %629 = vmatprep.subr.mxu0 0.0
        %630 = vmatpush1.msra.mxu0 0.0
        %631 = vmatprep.subr.mxu0 0.0
        %632 = vmatpush1.msra.mxu0 0.0
        %633 = vmatprep.subr.mxu0 0.0
        %634 = vmatpush1.msra.mxu0 0.0
        %635 = vmatprep.subr.mxu0 0.0
        %636 = vmatpush1.msra.mxu0 0.0
        %637 = vmatprep.subr.mxu0 0.0
        %638 = vmatpush1.msra.mxu0 0.0
        %639 = vmatprep.mubr.f32.mxu0 0.0
        %640 = vmatmul.mubr.f32.gmra.mrb[0].mxu0 %v438
        %v641 = vpop.f32.mrb[0].mxu0
        %v642 = vadd.f32 1e-05, %v641
        %v643 = vpop.f32.mrb[0].mxu0
        %644 = vmatprep.mubr.f32.mxu0 0.0
        %645 = vmatmul.mubr.f32.gmra.mrb[0].mxu0 %v440
        %v646 = vpop.f32.mrb[0].mxu0
        %v647 = vadd.f32 1e-05, %v646
        %v648 = vpop.f32.mrb[0].mxu0
        %649 = vmatprep.mubr.f32.mxu0 0.0
        %650 = vmatmul.mubr.f32.gmra.mrb[0].mxu0 %v442
        %v651 = vpop.f32.mrb[0].mxu0
        %v652 = vadd.f32 1e-05, %v651
        %v653 = vpop.f32.mrb[0].mxu0
        %654 = vmatprep.mubr.f32.mxu0 0.0
        %655 = vmatmul.mubr.f32.gmra.mrb[0].mxu0 %v444
        %v656 = vpop.f32.mrb[0].mxu0
        %v657 = vadd.f32 1e-05, %v656
        %v658 = vpop.f32.mrb[0].mxu0
        %659 = vmatprep.mubr.f32.mxu0 0.0
        %660 = vmatmul.mubr.f32.gmra.mrb[0].mxu0 %v446
        %v661 = vpop.f32.mrb[0].mxu0
        %v662 = vadd.f32 1e-05, %v661
        %v663 = vpop.f32.mrb[0].mxu0
        %664 = vmatprep.mubr.f32.mxu0 0.0
        %665 = vmatmul.mubr.f32.gmra.mrb[0].mxu0 %v448
        %v666 = vpop.f32.mrb[0].mxu0
        %v667 = vadd.f32 1e-05, %v666
        %v668 = vpop.f32.mrb[0].mxu0
        %669 = vmatprep.mubr.f32.mxu0 0.0
        %670 = vmatmul.mubr.f32.gmra.mrb[0].mxu0 %v450
        %v671 = vpop.f32.mrb[0].mxu0
        %v672 = vadd.f32 1e-05, %v671
        %v673 = vpop.f32.mrb[0].mxu0
        %674 = vmatprep.mubr.f32.mxu0 0.0
        %675 = vmatmul.mubr.f32.gmra.mrb[0].mxu0 %v452
        %v676 = vpop.f32.mrb[0].mxu0
        %v677 = vadd.f32 1e-05, %v676
        %v678 = vpop.f32.mrb[0].mxu0
        %679 = vdwg.mxu0
        %v680 = vrsqrt.pop %v642
        %v681 = vrsqrt.pop %v647
        %v682 = vrsqrt.pop %v652
        %v683 = vrsqrt.pop %v657
        %v684 = vrsqrt.pop %v662
        %v685 = vrsqrt.pop %v667
        %v686 = vrsqrt.pop %v672
        %v687 = vrsqrt.pop %v677
        %v688 = vmul.f32 %v559, %v680
        %v689 = vmul.f32 %v560, %v681
        %v690 = vmul.f32 %v561, %v682
        %v691 = vmul.f32 %v562, %v683
        %v692 = vmul.f32 %v563, %v684
        %v693 = vmul.f32 %v564, %v685
        %v694 = vmul.f32 %v565, %v686
        %v695 = vmul.f32 %v566, %v687
        %696 = vset.pattern.permute.xlu0 73
        %697 = vperm.xlu0 %696, %v168
        %v698 = vpop.permute.xlu0 %697
        %700 = vset.pattern.permute.xlu0 73
        %701 = vperm.xlu0 %700, %v169
        %v702 = vpop.permute.xlu0 %701
        %704 = vset.pattern.permute.xlu0 73
        %705 = vperm.xlu0 %704, %v170
        %v706 = vpop.permute.xlu0 %705
        %708 = vset.pattern.permute.xlu0 73
        %709 = vperm.xlu0 %708, %v171
        %v710 = vpop.permute.xlu0 %709
        %712 = vset.pattern.permute.xlu0 73
        %713 = vperm.xlu0 %712, %v172
        %v714 = vpop.permute.xlu0 %713
        %716 = vset.pattern.permute.xlu0 73
        %717 = vperm.xlu0 %716, %v173
        %v718 = vpop.permute.xlu0 %717
        %720 = vset.pattern.permute.xlu0 73
        %721 = vperm.xlu0 %720, %v174
        %v722 = vpop.permute.xlu0 %721
        %724 = vset.pattern.permute.xlu0 73
        %725 = vperm.xlu0 %724, %v175
        %v726 = vpop.permute.xlu0 %725
        %v728 = vmul.f32 %v688, %v698
        %v729 = vmul.f32 %v689, %v702
        %v730 = vmul.f32 %v690, %v706
        %v731 = vmul.f32 %v691, %v710
        %v732 = vmul.f32 %v692, %v714
        %v733 = vmul.f32 %v693, %v718
        %v734 = vmul.f32 %v694, %v722
        %v735 = vmul.f32 %v695, %v726
        %736 = vset.pattern.permute.xlu0 74
        %737 = vperm.xlu0 %736, %v168
        %v738 = vpop.permute.xlu0 %737
        %740 = vset.pattern.permute.xlu0 74
        %741 = vperm.xlu0 %740, %v169
        %v742 = vpop.permute.xlu0 %741
        %744 = vset.pattern.permute.xlu0 74
        %745 = vperm.xlu0 %744, %v170
        %v746 = vpop.permute.xlu0 %745
        %748 = vset.pattern.permute.xlu0 74
        %749 = vperm.xlu0 %748, %v171
        %v750 = vpop.permute.xlu0 %749
        %752 = vset.pattern.permute.xlu0 74
        %753 = vperm.xlu0 %752, %v172
        %v754 = vpop.permute.xlu0 %753
        %756 = vset.pattern.permute.xlu0 74
        %757 = vperm.xlu0 %756, %v173
        %v758 = vpop.permute.xlu0 %757
        %760 = vset.pattern.permute.xlu0 74
        %761 = vperm.xlu0 %760, %v174
        %v762 = vpop.permute.xlu0 %761
        %764 = vset.pattern.permute.xlu0 74
        %765 = vperm.xlu0 %764, %v175
        %v766 = vpop.permute.xlu0 %765
        %v768 = vadd.f32 %v728, %v738
        %v769 = vadd.f32 %v729, %v742
        %v770 = vadd.f32 %v730, %v746
        %v771 = vadd.f32 %v731, %v750
        %v772 = vadd.f32 %v732, %v754
        %v773 = vadd.f32 %v733, %v758
        %v774 = vadd.f32 %v734, %v762
        %v775 = vadd.f32 %v735, %v766
        %776 = vset.pattern.permute.xlu0 70
        %777 = vperm.xlu0 %776, %v167
        %v778 = vpop.permute.xlu0 %777
        %v780 = vsel %vm437, %v167, 0
        %782 = vmatprep.subr.mxu0 0.0
        %783 = vmatpush1.msra.mxu0 %v768
        %784 = vmatprep.subr.mxu0 0.0
        %785 = vmatpush1.msra.mxu0 %v769
        %786 = vmatprep.subr.mxu0 0.0
        %787 = vmatpush1.msra.mxu0 %v770
        %788 = vmatprep.subr.mxu0 0.0
        %789 = vmatpush1.msra.mxu0 %v771
        %790 = vmatprep.subr.mxu0 0.0
        %791 = vmatpush1.msra.mxu0 %v772
        %792 = vmatprep.subr.mxu0 0.0
        %793 = vmatpush1.msra.mxu0 %v773
        %794 = vmatprep.subr.mxu0 0.0
        %795 = vmatpush1.msra.mxu0 %v774
        %796 = vmatprep.subr.mxu0 0.0
        %797 = vmatpush1.msra.mxu0 %v775
        %798 = vmatprep.subr.mxu0 0.0
        %799 = vmatpush1.msra.mxu0 0.0
        %800 = vmatprep.subr.mxu0 0.0
        %801 = vmatpush1.msra.mxu0 0.0
        %802 = vmatprep.subr.mxu0 0.0
        %803 = vmatpush1.msra.mxu0 0.0
        %804 = vmatprep.subr.mxu0 0.0
        %805 = vmatpush1.msra.mxu0 0.0
        %806 = vmatprep.subr.mxu0 0.0
        %807 = vmatpush1.msra.mxu0 0.0
        %808 = vmatprep.subr.mxu0 0.0
        %809 = vmatpush1.msra.mxu0 0.0
        %810 = vmatprep.subr.mxu0 0.0
        %811 = vmatpush1.msra.mxu0 0.0
        %812 = vmatprep.subr.mxu0 0.0
        %813 = vmatpush1.msra.mxu0 0.0
        %814 = vmatprep.subr.mxu0 0.0
        %815 = vmatpush1.msra.mxu0 0.0
        %816 = vmatprep.subr.mxu0 0.0
        %817 = vmatpush1.msra.mxu0 0.0
        %818 = vmatprep.subr.mxu0 0.0
        %819 = vmatpush1.msra.mxu0 0.0
        %820 = vmatprep.subr.mxu0 0.0
        %821 = vmatpush1.msra.mxu0 0.0
        %822 = vmatprep.subr.mxu0 0.0
        %823 = vmatpush1.msra.mxu0 0.0
        %824 = vmatprep.subr.mxu0 0.0
        %825 = vmatpush1.msra.mxu0 0.0
        %826 = vmatprep.subr.mxu0 0.0
        %827 = vmatpush1.msra.mxu0 0.0
        %828 = vmatprep.subr.mxu0 0.0
        %829 = vmatpush1.msra.mxu0 0.0
        %830 = vmatprep.subr.mxu0 0.0
        %831 = vmatpush1.msra.mxu0 0.0
        %832 = vmatprep.subr.mxu0 0.0
        %833 = vmatpush1.msra.mxu0 0.0
        %834 = vmatprep.subr.mxu0 0.0
        %835 = vmatpush1.msra.mxu0 0.0
        %836 = vmatprep.subr.mxu0 0.0
        %837 = vmatpush1.msra.mxu0 0.0
        %838 = vmatprep.subr.mxu0 0.0
        %839 = vmatpush1.msra.mxu0 0.0
        %840 = vmatprep.subr.mxu0 0.0
        %841 = vmatpush1.msra.mxu0 0.0
        %842 = vmatprep.subr.mxu0 0.0
        %843 = vmatpush1.msra.mxu0 0.0
        %844 = vmatprep.subr.mxu0 0.0
        %845 = vmatpush1.msra.mxu0 0.0
        %846 = vmatprep.mubr.f32.mxu0 0.0
        %847 = vmatmul.mubr.f32.gmra.mrb[0].mxu0 %v780
        %v848 = vpop.f32.mrb[0].mxu0
        %v849 = vadd.f32 %v778, %v848
        %v850 = vpop.f32.mrb[0].mxu0
        %851 = vdwg.mxu0
        %v852 = vtanh.pop %v849
        %v853 = vadd.f32 %v166, %v852
        %854 = vst [vmem:[%s161] sm:$0xff] %v853
        %s855 = sand.u32 %s93, 1
        %s856 = scalar_lea.sflag [#allocation3], %s855
        %s857 = sand.u32 %s93, 1
        %s858 = smul.addr %s857, 8
        %s859 = scalar_lea.vmem [#allocation2], %s858
        // Predicated region
        $region33: #{depthwise_nuisance_generator.1} parent=31 // pred_check
          %p860 = pneg %p103
        $region34: #{depthwise_nuisance_generator.1} parent=31 // pred_check_branch
          %862 = sbr.rel (%p860) target = $region36
        $region35: #{depthwise_nuisance_generator.1} parent=31 // pred_region
          %s864 = ssub.s32 128, 128
          %865 = vsyncadd %s856, %s864
          %s866 = smul.addr %s17, 128
          %s867 = scalar_lea.hbm %s3, %s866
          %s869 = sshll.u32 %s859, 4
          %s870 = int_to_ptr.vmem [resolvable:$true] %s869
          %872 = dma.vmem_to_hbm [thread:$0]  %s870, 128, %s867, %s856
        $region36: #{depthwise_nuisance_generator.1} parent=31 // pred_fallthru
          _
      $region32: #{depthwise_nuisance_generator.1} parent=5 // pred_fallthru
        _
      %p873 = scmp.le.s32.totalorder 2, %s12
      // Predicated region
      $region37: #{depthwise_nuisance_generator.1} parent=5 // pred_check
        %p874 = pneg %p873
      $region38: #{depthwise_nuisance_generator.1} parent=5 // pred_check_branch
        %876 = sbr.rel (%p874) target = $region40
      $region39: #{depthwise_nuisance_generator.1} parent=5 // pred_region
        %s877 = ssub.s32 %s12, 2
        // Predicated region
        $region41: #{depthwise_nuisance_generator.1} parent=39 // pred_check
          %p878 = pneg %p109
        $region42: #{depthwise_nuisance_generator.1} parent=39 // pred_check_branch
          %880 = sbr.rel (%p878) target = $region44
        $region43: #{depthwise_nuisance_generator.1} parent=39 // pred_region
          %s881 = sand.u32 %s94, 1
          %s882 = scalar_lea.sflag [#allocation3], %s881
          %s883 = sand.u32 %s94, 1
          %s884 = smul.addr %s883, 8
          %s885 = scalar_lea.vmem [#allocation2], %s884
          %886 = dma.done %s882, 128
        $region44: #{depthwise_nuisance_generator.1} parent=39 // pred_fallthru
          _
      $region40: #{depthwise_nuisance_generator.1} parent=5 // pred_fallthru
        _
    $region6: #{depthwise_nuisance_generator.1} parent=1 // loop_footer
      %s16 = sadd.s32 1, %s12
    $region7: #{depthwise_nuisance_generator.1} parent=1 // loop_footer_branch
      %11 = sbr.rel target = $region3
    $region8: #{depthwise_nuisance_generator.1} parent=1 // loop_exit
      _
    %887 = vsyncpa [#allocation3], 1
    %s888 = scalar_lea.sflag [#allocation3], 1
    %889 = vsyncpa %s888, 1

</llo_original>
